<compile_context>
chip_gen: v7x
topology: tpu7x:2x2x1
jax: 0.10.0
libtpu: 0.0.40
codegen_flags: <defaults>
</compile_context>

<pallas_src>
import jax
import jax.numpy as jnp
from jax.experimental import pallas as pl
from jax.experimental.pallas import tpu as pltpu


def _round_up(n, m):
    return ((n + m - 1) // m) * m


# ---------------------------------------------------------------------------
# Kernel: one batch tile per grid step, all weights resident, biases in the MXU.
# ---------------------------------------------------------------------------
def actor_kernel(x_ref, w1_ref, w2_ref, wh_ref, out_ref):
    # Layer 1: [x | 1] @ [W1 ; b1]  (bias folded via the ones column), then ReLU.
    h1 = jnp.dot(x_ref[...], w1_ref[...], preferred_element_type=jnp.float32)
    h1 = jnp.maximum(h1, 0.0).astype(jnp.bfloat16)     # h1[:, 400] carries 1.0

    # Layer 2: bias folded via the carry-ones lane (row 400 of packed W2).
    h2 = jnp.dot(h1, w2_ref[...], preferred_element_type=jnp.float32)
    h2 = jnp.maximum(h2, 0.0).astype(jnp.bfloat16)     # h2[:, 300] carries 1.0

    # Fused heads [alpha | beta | pad]: bias folded via row 300 of packed Wh.
    z = jnp.dot(h2, wh_ref[...], preferred_element_type=jnp.float32)

    # Stable softplus(z) + 1  (matches torch.F.softplus numerically), f32 math.
    sp = jnp.maximum(z, 0.0) + jnp.log1p(jnp.exp(-jnp.abs(z)))
    out_ref[...] = (sp + 1.0).astype(out_ref.dtype)


# ---------------------------------------------------------------------------
# Parameter construction (mimics nn.Linear defaults + the module's post-init scaling)
# ---------------------------------------------------------------------------
def init_params(key, num_inputs, num_actions):
    def linear(k, fan_in, fan_out):
        kw, kb = jax.random.split(k)
        bound = 1.0 / jnp.sqrt(float(fan_in))
        w = jax.random.uniform(kw, (fan_in, fan_out), jnp.float32, -bound, bound)
        b = jax.random.uniform(kb, (1, fan_out), jnp.float32, -bound, bound)
        return w, b

    k1, k2, k3, k4 = jax.random.split(key, 4)
    w1, b1 = linear(k1, num_inputs, 400)
    w2, b2 = linear(k2, 400, 300)
    wa, ba = linear(k3, 300, num_actions)
    wb, bb = linear(k4, 300, num_actions)

    # Module post-init: alpha weight *= 0.1, alpha bias *= 0 (twice), beta weight *= 0.1.
    # Note: beta bias is NOT zeroed in the PyTorch module.
    wa = wa * 0.1
    ba = ba * 0.0
    wb = wb * 0.1

    return dict(w1=w1, b1=b1, w2=w2, b2=b2, wa=wa, ba=ba, wb=wb, bb=bb)


def pack_params(params):
    """Fold all biases into the weights (ones-column / carry-ones-lane trick),
    fuse the two heads, pad N dims to multiples of 128, and cast to bf16."""
    w1, b1 = params["w1"], params["b1"]
    w2, b2 = params["w2"], params["b2"]
    wa, ba = params["wa"], params["ba"]
    wb, bb = params["wb"], params["bb"]

    d_in, H1 = w1.shape          # (num_inputs, 400)
    H2 = w2.shape[1]             # 300
    A = wa.shape[1]

    h1_p = _round_up(H1 + 1, 128)        # 400(+1 ones lane) -> 512
    h2_p = _round_up(H2 + 1, 128)        # 300(+1 ones lane) -> 384
    head_p = _round_up(2 * A, 128)       # 2A -> 128

    # W1 packed: (d_in + 1, h1_p); last row = b1; carry-ones lane at column H1.
    w1p = jnp.zeros((d_in + 1, h1_p), jnp.float32)
    w1p = w1p.at[:d_in, :H1].set(w1)
    w1p = w1p.at[d_in, :H1].set(b1[0])
    w1p = w1p.at[d_in, H1].set(1.0)

    # W2 packed: (h1_p, h2_p); row H1 (the ones lane) = b2; carry-ones lane at col H2.
    w2p = jnp.zeros((h1_p, h2_p), jnp.float32)
    w2p = w2p.at[:H1, :H2].set(w2)
    w2p = w2p.at[H1, :H2].set(b2[0])
    w2p = w2p.at[H1, H2].set(1.0)

    # Fused head: (h2_p, head_p) = [Wa | Wb | 0]; row H2 (the ones lane) = [ba | bb | 0].
    wh = jnp.concatenate([wa, wb], axis=1)       # (H2, 2A)
    bh = jnp.concatenate([ba, bb], axis=1)       # (1, 2A)
    whp = jnp.zeros((h2_p, head_p), jnp.float32)
    whp = whp.at[:H2, :2 * A].set(wh)
    whp = whp.at[H2, :2 * A].set(bh[0])

    return dict(
        w1=w1p.astype(jnp.bfloat16),
        w2=w2p.astype(jnp.bfloat16),
        wh=whp.astype(jnp.bfloat16),
        num_actions=A,
        d_in=d_in,
        head_pad=head_p,
    )


# ---------------------------------------------------------------------------
# Wrapper
# ---------------------------------------------------------------------------
def actor_network_forward(x, packed, *, block_b=1024):
    """x: (B, num_inputs) f32.  packed: output of pack_params."""
    B, d_in = x.shape
    assert d_in == packed["d_in"]
    A = packed["num_actions"]
    head_p = packed["head_pad"]
    d_aug = d_in + 1

    # Batch tile: 16-aligned (bf16 tiles), capped at block_b, and derived from
    # cdiv(B, 2) so mid-sized batches split into >=2 "parallel" grid steps
    # (both TensorCores busy on v7x; harmless pipelining on v5e/v6e).
    tb = min(block_b, _round_up(pl.cdiv(B, 2), 16))
    b_pad = _round_up(B, tb)

    # Augment x with the ones column (bias-in-MXU), pad batch only.
    x_aug = jnp.concatenate(
        [x.astype(jnp.bfloat16), jnp.ones((B, 1), jnp.bfloat16)], axis=1)
    if b_pad > B:
        x_aug = jnp.pad(x_aug, ((0, b_pad - B), (0, 0)))

    weight_keys = ("w1", "w2", "wh")
    weight_specs = [
        pl.BlockSpec(packed[k].shape, lambda i: (0, 0)) for k in weight_keys
    ]

    out = pl.pallas_call(
        actor_kernel,
        out_shape=jax.ShapeDtypeStruct((b_pad, head_p), jnp.bfloat16),
        grid=(b_pad // tb,),
        in_specs=[pl.BlockSpec((tb, d_aug), lambda i: (i, 0))] + weight_specs,
        out_specs=pl.BlockSpec((tb, head_p), lambda i: (i, 0)),
        compiler_params=pltpu.CompilerParams(
            dimension_semantics=("parallel",)),
    )(x_aug, *(packed[k] for k in weight_keys))

    out = out.astype(jnp.float32)
    alpha = out[:B, :A]
    beta = out[:B, A:2 * A]
    return alpha, beta


# ---------------------------------------------------------------------------
# Pure-JAX f32 reference (original unpadded/unfused params)
# ---------------------------------------------------------------------------
def _reference_forward(x, p):
    h1 = jax.nn.relu(x @ p["w1"] + p["b1"])
    h2 = jax.nn.relu(h1 @ p["w2"] + p["b2"])
    alpha = jax.nn.softplus(h2 @ p["wa"] + p["ba"]) + 1.0
    beta = jax.nn.softplus(h2 @ p["wb"] + p["bb"]) + 1.0
    return alpha, beta


if __name__ == "__main__":
    num_inputs = 32
    num_actions = 4
    batch = 8

    key = jax.random.PRNGKey(0)
    kx, kp = jax.random.split(key)
    x = jax.random.normal(kx, (batch, num_inputs), dtype=jnp.float32)

    params = init_params(kp, num_inputs, num_actions)
    packed = pack_params(params)

    alpha, beta = actor_network_forward(x, packed)
    jax.block_until_ready((alpha, beta))

    # Correctness vs. f32 reference (tolerance covers bf16 matmul inputs / bf16 out).
    ref_alpha, ref_beta = _reference_forward(x, params)
    assert alpha.shape == (batch, num_actions) and beta.shape == (batch, num_actions)
    assert jnp.allclose(alpha, ref_alpha, atol=3e-2, rtol=3e-2)
    assert jnp.allclose(beta, ref_beta, atol=3e-2, rtol=3e-2)
    assert bool(jnp.all(alpha > 1.0)) and bool(jnp.all(beta > 1.0))

    print("KERNEL_OK")
</pallas_src>

<mosaic_0001>
module attributes {stable_mosaic.version = 11 : i64} {
  func.func @actor_kernel(%arg0: i32, %arg1: memref<16x33xbf16, #tpu.memory_space<vmem>>, %arg2: memref<33x512xbf16, #tpu.memory_space<vmem>>, %arg3: memref<512x384xbf16, #tpu.memory_space<vmem>>, %arg4: memref<384x128xbf16, #tpu.memory_space<vmem>>, %arg5: memref<16x128xbf16, #tpu.memory_space<vmem>>) attributes {dimension_semantics = [#tpu.dimension_semantics<parallel>], iteration_bounds = array<i64: 1>, scalar_prefetch = 0 : i64, scratch_operands = 0 : i64, tpu.core_type = #tpu.core_type<tc>, window_params = [{transform_indices = @transform_0, window_bounds = array<i64: 16, 33>}, {pipeline_mode = #tpu.pipeline_mode<synchronous>, transform_indices = @transform_1, window_bounds = array<i64: 33, 512>}, {pipeline_mode = #tpu.pipeline_mode<synchronous>, transform_indices = @transform_2, window_bounds = array<i64: 512, 384>}, {pipeline_mode = #tpu.pipeline_mode<synchronous>, transform_indices = @transform_3, window_bounds = array<i64: 384, 128>}, {transform_indices = @transform_4, window_bounds = array<i64: 16, 128>}]} {
    %c0 = arith.constant 0 : index
    %c0_0 = arith.constant 0 : index
    %0 = vector.load %arg1[%c0, %c0_0] : memref<16x33xbf16, #tpu.memory_space<vmem>>, vector<16x33xbf16>
    %c0_1 = arith.constant 0 : index
    %c0_2 = arith.constant 0 : index
    %1 = vector.load %arg2[%c0_1, %c0_2] : memref<33x512xbf16, #tpu.memory_space<vmem>>, vector<33x512xbf16>
    %cst = arith.constant dense<0.000000e+00> : vector<16x512xf32>
    %2 = tpu.matmul %0, %1, %cst {dimension_numbers = #tpu.dot_dimension_numbers<[1], [0], [0], [1], [0, 0, 1, 1], [], []>} : vector<16x33xbf16>, vector<33x512xbf16>, vector<16x512xf32> -> vector<16x512xf32>
    %cst_3 = arith.constant 0.000000e+00 : f32
    %3 = vector.broadcast %cst_3 : f32 to vector<16x512xf32>
    %4 = arith.maximumf %2, %3 : vector<16x512xf32>
    %5 = arith.truncf %4 : vector<16x512xf32> to vector<16x512xbf16>
    %c0_4 = arith.constant 0 : index
    %c0_5 = arith.constant 0 : index
    %6 = vector.load %arg3[%c0_4, %c0_5] : memref<512x384xbf16, #tpu.memory_space<vmem>>, vector<512x384xbf16>
    %cst_6 = arith.constant dense<0.000000e+00> : vector<16x384xf32>
    %7 = tpu.matmul %5, %6, %cst_6 {dimension_numbers = #tpu.dot_dimension_numbers<[1], [0], [0], [1], [0, 0, 1, 1], [], []>} : vector<16x512xbf16>, vector<512x384xbf16>, vector<16x384xf32> -> vector<16x384xf32>
    %cst_7 = arith.constant 0.000000e+00 : f32
    %8 = vector.broadcast %cst_7 : f32 to vector<16x384xf32>
    %9 = arith.maximumf %7, %8 : vector<16x384xf32>
    %10 = arith.truncf %9 : vector<16x384xf32> to vector<16x384xbf16>
    %c0_8 = arith.constant 0 : index
    %c0_9 = arith.constant 0 : index
    %11 = vector.load %arg4[%c0_8, %c0_9] : memref<384x128xbf16, #tpu.memory_space<vmem>>, vector<384x128xbf16>
    %cst_10 = arith.constant dense<0.000000e+00> : vector<16x128xf32>
    %12 = tpu.matmul %10, %11, %cst_10 {dimension_numbers = #tpu.dot_dimension_numbers<[1], [0], [0], [1], [0, 0, 1, 1], [], []>} : vector<16x384xbf16>, vector<384x128xbf16>, vector<16x128xf32> -> vector<16x128xf32>
    %cst_11 = arith.constant 0.000000e+00 : f32
    %13 = vector.broadcast %cst_11 : f32 to vector<16x128xf32>
    %14 = arith.maximumf %12, %13 : vector<16x128xf32>
    %15 = math.absf %12 : vector<16x128xf32>
    %cst_12 = arith.constant 0.000000e+00 : f32
    %16 = vector.broadcast %cst_12 : f32 to vector<16x128xf32>
    %17 = arith.subf %16, %15 : vector<16x128xf32>
    %18 = math.exp %17 : vector<16x128xf32>
    %19 = math.log1p %18 : vector<16x128xf32>
    %20 = arith.addf %14, %19 : vector<16x128xf32>
    %cst_13 = arith.constant 1.000000e+00 : f32
    %21 = vector.broadcast %cst_13 : f32 to vector<16x128xf32>
    %22 = arith.addf %20, %21 : vector<16x128xf32>
    %23 = arith.truncf %22 : vector<16x128xf32> to vector<16x128xbf16>
    %c0_14 = arith.constant 0 : index
    %c0_15 = arith.constant 0 : index
    %24 = vector.load %arg5[%c0_14, %c0_15] : memref<16x128xbf16, #tpu.memory_space<vmem>>, vector<16x128xbf16>
    tpu.vector_store %arg5[%c0_14, %c0_15], %23 {strides = array<i32>} : memref<16x128xbf16, #tpu.memory_space<vmem>>, vector<16x128xbf16>,
    return
  }
  func.func @transform_0(%arg0: i32) -> (i32, i32) {
    %c0_i32 = arith.constant 0 : i32
    %c0_i32_0 = arith.constant 0 : i32
    return %arg0, %c0_i32 : i32, i32
  }
  func.func @transform_1(%arg0: i32) -> (i32, i32) {
    %c0_i32 = arith.constant 0 : i32
    %c0_i32_0 = arith.constant 0 : i32
    %c0_i32_1 = arith.constant 0 : i32
    return %c0_i32, %c0_i32_0 : i32, i32
  }
  func.func @transform_2(%arg0: i32) -> (i32, i32) {
    %c0_i32 = arith.constant 0 : i32
    %c0_i32_0 = arith.constant 0 : i32
    %c0_i32_1 = arith.constant 0 : i32
    return %c0_i32, %c0_i32_0 : i32, i32
  }
  func.func @transform_3(%arg0: i32) -> (i32, i32) {
    %c0_i32 = arith.constant 0 : i32
    %c0_i32_0 = arith.constant 0 : i32
    %c0_i32_1 = arith.constant 0 : i32
    return %c0_i32, %c0_i32_0 : i32, i32
  }
  func.func @transform_4(%arg0: i32) -> (i32, i32) {
    %c0_i32 = arith.constant 0 : i32
    %c0_i32_0 = arith.constant 0 : i32
    return %arg0, %c0_i32 : i32, i32
  }
}

</mosaic_0001>

<llo_original>
// kernel: tpu_custom_call.1
$region0: #{tpu_custom_call.1}
  #allocation0 [shape = 'u32[]', space=smem, size = 0x4, offset = 0x4, fixed_abs, tag = 'smem constant byte address 0x4 - core index']
  #allocation1 [shape = 'u32[144,128]{1,0:T(1,128)}', space=vmem, size = 0x12000, scoped, tag = 'internal scratch']
  %s0 = inlined_call_operand.hbm [shape: bf16[16,33], index: 0, kind: input, shape index: {}]
  %s1 = inlined_call_operand.hbm [shape: bf16[33,512], index: 1, kind: input, shape index: {}]
  %s2 = inlined_call_operand.hbm [shape: bf16[512,384], index: 2, kind: input, shape index: {}]
  %s3 = inlined_call_operand.hbm [shape: bf16[384,128], index: 3, kind: input, shape index: {}]
  %s4 = inlined_call_operand.hbm [shape: bf16[16,128], index: 4, kind: output, shape index: {}]
  %s5 = sld [smem:[#allocation0]]
  $region42: #{tpu_custom_call.1} parent=0
    _
  %s7 = ssub.s32 1, %s5
  %s8 = scalar_select 0, %s7, %s5
  $region1: #{tpu_custom_call.1} parent=0
    #allocation2 [shape = 'u8[4096]{0}', space=vmem, size = 0x1000, scoped, tag = 'input window, operand 0, single buffered']
    #allocation3 [shape = 's32[1]{0}', space=sflag, size = 0x4, scoped, tag = 'scoped memory for tpu_custom_call.1']
    #allocation4 [shape = 's32[1]{0}', space=sflag, size = 0x4, scoped, tag = 'scoped memory for tpu_custom_call.1']
    #allocation5 [shape = 'u8[40960]{0}', space=vmem, size = 0xa000, scoped, tag = 'input window, operand 1, single buffered']
    #allocation6 [shape = 's32[1]{0}', space=sflag, size = 0x4, scoped, tag = 'scoped memory for tpu_custom_call.1']
    #allocation7 [shape = 'u8[393216]{0}', space=vmem, size = 0x60000, scoped, tag = 'input window, operand 2, single buffered']
    #allocation8 [shape = 'u8[98304]{0}', space=vmem, size = 0x18000, scoped, tag = 'input window, operand 3, single buffered']
    #allocation9 [shape = 's32[1]{0}', space=sflag, size = 0x4, scoped, tag = 'scoped memory for tpu_custom_call.1']
    #allocation10 [shape = 'u8[4096]{0}', space=vmem, size = 0x1000, scoped, tag = 'output window, operand 0, single buffered']
    %9 = vsyncpa [#allocation3], 0
    %10 = vsyncpa [#allocation6], 0
    %11 = vsyncpa [#allocation9], 0
    %12 = vsyncpa [#allocation4], 0
    // Predicated region
    $region2: #{tpu_custom_call.1} parent=1 // pred_check
      _
    $region3: #{tpu_custom_call.1} parent=1 // pred_check_branch
      %14 = sbr.rel (0) target = $region5
    $region4: #{tpu_custom_call.1} parent=1 // pred_region
      %s16 = ssub.s32 128, 128
      %17 = vsyncadd [#allocation3], %s16
      %s18 = sshll.u32 [#allocation2], 4
      %s19 = int_to_ptr.vmem [resolvable:$true] %s18
      %24 = dma.hbm_to_vmem [thread:$0]  %s0, 128, %s19, [#allocation3], 64, 64, 4
    $region5: #{tpu_custom_call.1} parent=1 // pred_fallthru
      _
    // Predicated region
    $region6: #{tpu_custom_call.1} parent=1 // pred_check
      _
    $region7: #{tpu_custom_call.1} parent=1 // pred_check_branch
      %26 = sbr.rel (0) target = $region9
    $region8: #{tpu_custom_call.1} parent=1 // pred_region
      %s28 = ssub.s32 1280, 1280
      %29 = vsyncadd [#allocation6], %s28
      %s30 = sshll.u32 [#allocation5], 4
      %s31 = int_to_ptr.vmem [resolvable:$true] %s30
      %36 = dma.hbm_to_vmem [thread:$0]  %s1, 1280, %s31, [#allocation6], 256, 256, 16
    $region9: #{tpu_custom_call.1} parent=1 // pred_fallthru
      _
    // Predicated region
    $region10: #{tpu_custom_call.1} parent=1 // pred_check
      _
    $region11: #{tpu_custom_call.1} parent=1 // pred_check_branch
      %38 = sbr.rel (0) target = $region13
    $region12: #{tpu_custom_call.1} parent=1 // pred_region
      %s40 = ssub.s32 12288, 12288
      %41 = vsyncadd [#allocation6], %s40
      %s42 = sshll.u32 [#allocation7], 4
      %s43 = int_to_ptr.vmem [resolvable:$true] %s42
      %48 = dma.hbm_to_vmem [thread:$0]  %s2, 12288, %s43, [#allocation6], 192, 192, 12
    $region13: #{tpu_custom_call.1} parent=1 // pred_fallthru
      _
    // Predicated region
    $region14: #{tpu_custom_call.1} parent=1 // pred_check
      _
    $region15: #{tpu_custom_call.1} parent=1 // pred_check_branch
      %50 = sbr.rel (0) target = $region17
    $region16: #{tpu_custom_call.1} parent=1 // pred_region
      %s52 = ssub.s32 3072, 3072
      %53 = vsyncadd [#allocation9], %s52
      %s54 = sshll.u32 [#allocation8], 4
      %s55 = int_to_ptr.vmem [resolvable:$true] %s54
      %60 = dma.hbm_to_vmem [thread:$0]  %s3, 3072, %s55, [#allocation9], 64, 64, 4
    $region17: #{tpu_custom_call.1} parent=1 // pred_fallthru
      _
    // Predicated region
    $region18: #{tpu_custom_call.1} parent=1 // pred_check
      _
    $region19: #{tpu_custom_call.1} parent=1 // pred_check_branch
      %62 = sbr.rel (0) target = $region21
    $region20: #{tpu_custom_call.1} parent=1 // pred_region
      %63 = dma.done [#allocation3], 128
    $region21: #{tpu_custom_call.1} parent=1 // pred_fallthru
      _
    // Predicated region
    $region22: #{tpu_custom_call.1} parent=1 // pred_check
      _
    $region23: #{tpu_custom_call.1} parent=1 // pred_check_branch
      %65 = sbr.rel (0) target = $region25
    $region24: #{tpu_custom_call.1} parent=1 // pred_region
      %66 = dma.done [#allocation6], 1280
    $region25: #{tpu_custom_call.1} parent=1 // pred_fallthru
      _
    // Predicated region
    $region26: #{tpu_custom_call.1} parent=1 // pred_check
      _
    $region27: #{tpu_custom_call.1} parent=1 // pred_check_branch
      %68 = sbr.rel (0) target = $region29
    $region28: #{tpu_custom_call.1} parent=1 // pred_region
      %69 = dma.done [#allocation6], 12288
    $region29: #{tpu_custom_call.1} parent=1 // pred_fallthru
      _
    // Predicated region
    $region30: #{tpu_custom_call.1} parent=1 // pred_check
      _
    $region31: #{tpu_custom_call.1} parent=1 // pred_check_branch
      %71 = sbr.rel (0) target = $region33
    $region32: #{tpu_custom_call.1} parent=1 // pred_region
      %72 = dma.done [#allocation9], 3072
    $region33: #{tpu_custom_call.1} parent=1 // pred_fallthru
      _
    %v74 = vld [vmem:[#allocation2] sm:$0xf]
    %v75 = vld [vmem:[#allocation2 + $0x4] sm:$0xf]
    %v76 = vld [vmem:[#allocation5] sm:$0xff]
    %v77 = vld [vmem:[#allocation5 + $0x8] sm:$0xff]
    %v78 = vld [vmem:[#allocation5 + $0x10] sm:$0xff]
    %v79 = vld [vmem:[#allocation5 + $0x18] sm:$0xff]
    %v80 = vld [vmem:[#allocation5 + $0x20] sm:$0xff]
    %v81 = vld [vmem:[#allocation5 + $0x28] sm:$0xff]
    %v82 = vld [vmem:[#allocation5 + $0x30] sm:$0xff]
    %v83 = vld [vmem:[#allocation5 + $0x38] sm:$0xff]
    %v84 = vld [vmem:[#allocation5 + $0x40] sm:$0x11]
    %v85 = vld [vmem:[#allocation5 + $0x48] sm:$0x11]
    %v88 = vunpack.c.l.b16 %v74
    %v89 = vunpack.c.l.b16 %v75
    %v90 = vpack.c.b16 %v89, %v88
    %v101 = vunpack.c.l.b16 %v76
    %v102 = vunpack.c.h.b16 %v76
    %v103 = vunpack.c.l.b16 %v77
    %v104 = vunpack.c.h.b16 %v77
    %v105 = vunpack.c.l.b16 %v78
    %v106 = vunpack.c.h.b16 %v78
    %v107 = vunpack.c.l.b16 %v79
    %v108 = vunpack.c.h.b16 %v79
    %v109 = vunpack.c.l.b16 %v80
    %v110 = vunpack.c.h.b16 %v80
    %v111 = vunpack.c.l.b16 %v81
    %v112 = vunpack.c.h.b16 %v81
    %v113 = vunpack.c.l.b16 %v82
    %v114 = vunpack.c.h.b16 %v82
    %v115 = vunpack.c.l.b16 %v83
    %v116 = vunpack.c.h.b16 %v83
    %v117 = vunpack.c.l.b16 %v84
    %v118 = vunpack.c.h.b16 %v84
    %v119 = vunpack.c.l.b16 %v85
    %v120 = vunpack.c.h.b16 %v85
    %v121 = vpack.c.b16 %v105, %v101
    %v122 = vpack.c.b16 %v106, %v102
    %v123 = vpack.c.b16 %v107, %v103
    %v124 = vpack.c.b16 %v108, %v104
    %v125 = vpack.c.b16 %v113, %v109
    %v126 = vpack.c.b16 %v114, %v110
    %v127 = vpack.c.b16 %v115, %v111
    %v128 = vpack.c.b16 %v116, %v112
    %v129 = vpack.c.b16 %v117, %v117
    %v130 = vpack.c.b16 %v118, %v118
    %v131 = vpack.c.b16 %v119, %v119
    %v132 = vpack.c.b16 %v120, %v120
    %vm141 = vcmask 269312
    %v143 = vsel %vm141, %v90, 0
    %vm145 = vcmask 1040384
    %v146 = vsel 0, 4294967295, 65535
    %v147 = vsel %vm145, %v146, 0
    %v149 = vand.u32 %v129, %v147
    %v152 = vand.u32 %v130, %v147
    %v155 = vand.u32 %v131, %v147
    %v158 = vand.u32 %v132, %v147
    %160 = vmatprep.subr.bf16.mxu0 %v122
    %161 = vmatpush1.bf16.msra.mxu0 %v121
    %162 = vmatprep.subr.bf16.mxu0 %v126
    %163 = vmatpush1.bf16.msra.mxu0 %v125
    %164 = vmatprep.subr.bf16.mxu0 %v152
    %165 = vmatpush1.bf16.msra.mxu0 %v149
    %166 = vmatprep.subr.bf16.mxu0 0
    %167 = vmatpush1.bf16.msra.mxu0 0
    %168 = vmatprep.subr.bf16.mxu0 0
    %169 = vmatpush1.bf16.msra.mxu0 0
    %170 = vmatprep.subr.bf16.mxu0 0
    %171 = vmatpush1.bf16.msra.mxu0 0
    %172 = vmatprep.subr.bf16.mxu0 0
    %173 = vmatpush1.bf16.msra.mxu0 0
    %174 = vmatprep.subr.bf16.mxu0 0
    %175 = vmatpush1.bf16.msra.mxu0 0
    %176 = vmatprep.subr.bf16.mxu0 0
    %177 = vmatpush1.bf16.msra.mxu0 0
    %178 = vmatprep.subr.bf16.mxu0 0
    %179 = vmatpush1.bf16.msra.mxu0 0
    %180 = vmatprep.subr.bf16.mxu0 0
    %181 = vmatpush1.bf16.msra.mxu0 0
    %182 = vmatprep.subr.bf16.mxu0 0
    %183 = vmatpush1.bf16.msra.mxu0 0
    %184 = vmatprep.subr.bf16.mxu0 0
    %185 = vmatpush1.bf16.msra.mxu0 0
    %186 = vmatprep.subr.bf16.mxu0 0
    %187 = vmatpush1.bf16.msra.mxu0 0
    %188 = vmatprep.subr.bf16.mxu0 0
    %189 = vmatpush1.bf16.msra.mxu0 0
    %190 = vmatprep.subr.bf16.mxu0 0
    %191 = vmatpush1.bf16.msra.mxu0 0
    %192 = vmatprep.mubr.bf16.mxu0 0
    %193 = vmatmul.mubr.bf16.gmra.mrb[0].mxu0 %v143
    %v194 = vpop.f32.mrb[0].mxu0
    %v195 = vadd.f32 0.0, %v194
    %v196 = vpop.f32.mrb[0].mxu0
    %v197 = vadd.f32 0.0, %v196
    %v198 = vpop.f32.mrb[0].mxu0
    %v199 = vadd.f32 0.0, %v198
    %v200 = vpop.f32.mrb[0].mxu0
    %v201 = vadd.f32 0.0, %v200
    %202 = vdwg.mxu0
    %203 = vmatprep.subr.bf16.mxu0 %v124
    %204 = vmatpush1.bf16.msra.mxu0 %v123
    %205 = vmatprep.subr.bf16.mxu0 %v128
    %206 = vmatpush1.bf16.msra.mxu0 %v127
    %207 = vmatprep.subr.bf16.mxu0 %v158
    %208 = vmatpush1.bf16.msra.mxu0 %v155
    %209 = vmatprep.subr.bf16.mxu0 0
    %210 = vmatpush1.bf16.msra.mxu0 0
    %211 = vmatprep.subr.bf16.mxu0 0
    %212 = vmatpush1.bf16.msra.mxu0 0
    %213 = vmatprep.subr.bf16.mxu0 0
    %214 = vmatpush1.bf16.msra.mxu0 0
    %215 = vmatprep.subr.bf16.mxu0 0
    %216 = vmatpush1.bf16.msra.mxu0 0
    %217 = vmatprep.subr.bf16.mxu0 0
    %218 = vmatpush1.bf16.msra.mxu0 0
    %219 = vmatprep.subr.bf16.mxu0 0
    %220 = vmatpush1.bf16.msra.mxu0 0
    %221 = vmatprep.subr.bf16.mxu0 0
    %222 = vmatpush1.bf16.msra.mxu0 0
    %223 = vmatprep.subr.bf16.mxu0 0
    %224 = vmatpush1.bf16.msra.mxu0 0
    %225 = vmatprep.subr.bf16.mxu0 0
    %226 = vmatpush1.bf16.msra.mxu0 0
    %227 = vmatprep.subr.bf16.mxu0 0
    %228 = vmatpush1.bf16.msra.mxu0 0
    %229 = vmatprep.subr.bf16.mxu0 0
    %230 = vmatpush1.bf16.msra.mxu0 0
    %231 = vmatprep.subr.bf16.mxu0 0
    %232 = vmatpush1.bf16.msra.mxu0 0
    %233 = vmatprep.subr.bf16.mxu0 0
    %234 = vmatpush1.bf16.msra.mxu0 0
    %235 = vmatprep.mubr.bf16.mxu0 0
    %236 = vmatmul.mubr.bf16.gmra.mrb[0].mxu0 %v143
    %v237 = vpop.f32.mrb[0].mxu0
    %v238 = vadd.f32 0.0, %v237
    %v239 = vpop.f32.mrb[0].mxu0
    %v240 = vadd.f32 0.0, %v239
    %v241 = vpop.f32.mrb[0].mxu0
    %v242 = vadd.f32 0.0, %v241
    %v243 = vpop.f32.mrb[0].mxu0
    %v244 = vadd.f32 0.0, %v243
    %245 = vdwg.mxu0
    %v246 = vmax.f32 %v195, 0.0
    %v247 = vmax.f32 %v197, 0.0
    %v248 = vmax.f32 %v238, 0.0
    %v249 = vmax.f32 %v240, 0.0
    %v250 = vmax.f32 %v199, 0.0
    %v251 = vmax.f32 %v201, 0.0
    %v252 = vmax.f32 %v242, 0.0
    %v253 = vmax.f32 %v244, 0.0
    %v254 = vpack.c.bf16 %v250, %v246
    %v255 = vpack.c.bf16 %v251, %v247
    %v256 = vpack.c.bf16 %v252, %v248
    %v257 = vpack.c.bf16 %v253, %v249
    %v258 = vld [vmem:[#allocation7] sm:$0xff]
    %v259 = vld [vmem:[#allocation7 + $0x8] sm:$0xf]
    %v260 = vld [vmem:[#allocation7 + $0xc] sm:$0xff]
    %v261 = vld [vmem:[#allocation7 + $0x14] sm:$0xf]
    %v262 = vld [vmem:[#allocation7 + $0x18] sm:$0xff]
    %v263 = vld [vmem:[#allocation7 + $0x20] sm:$0xf]
    %v264 = vld [vmem:[#allocation7 + $0x24] sm:$0xff]
    %v265 = vld [vmem:[#allocation7 + $0x2c] sm:$0xf]
    %v266 = vld [vmem:[#allocation7 + $0x30] sm:$0xff]
    %v267 = vld [vmem:[#allocation7 + $0x38] sm:$0xf]
    %v268 = vld [vmem:[#allocation7 + $0x3c] sm:$0xff]
    %v269 = vld [vmem:[#allocation7 + $0x44] sm:$0xf]
    %v270 = vld [vmem:[#allocation7 + $0x48] sm:$0xff]
    %v271 = vld [vmem:[#allocation7 + $0x50] sm:$0xf]
    %v272 = vld [vmem:[#allocation7 + $0x54] sm:$0xff]
    %v273 = vld [vmem:[#allocation7 + $0x5c] sm:$0xf]
    %v274 = vld [vmem:[#allocation7 + $0x60] sm:$0xff]
    %v275 = vld [vmem:[#allocation7 + $0x68] sm:$0xf]
    %v276 = vld [vmem:[#allocation7 + $0x6c] sm:$0xff]
    %v277 = vld [vmem:[#allocation7 + $0x74] sm:$0xf]
    %v278 = vld [vmem:[#allocation7 + $0x78] sm:$0xff]
    %v279 = vld [vmem:[#allocation7 + $0x80] sm:$0xf]
    %v280 = vld [vmem:[#allocation7 + $0x84] sm:$0xff]
    %v281 = vld [vmem:[#allocation7 + $0x8c] sm:$0xf]
    %v282 = vld [vmem:[#allocation7 + $0x90] sm:$0xff]
    %v283 = vld [vmem:[#allocation7 + $0x98] sm:$0xf]
    %v284 = vld [vmem:[#allocation7 + $0x9c] sm:$0xff]
    %v285 = vld [vmem:[#allocation7 + $0xa4] sm:$0xf]
    %v286 = vld [vmem:[#allocation7 + $0xa8] sm:$0xff]
    %v287 = vld [vmem:[#allocation7 + $0xb0] sm:$0xf]
    %v288 = vld [vmem:[#allocation7 + $0xb4] sm:$0xff]
    %v289 = vld [vmem:[#allocation7 + $0xbc] sm:$0xf]
    %v290 = vld [vmem:[#allocation7 + $0xc0] sm:$0xff]
    %v291 = vld [vmem:[#allocation7 + $0xc8] sm:$0xf]
    %v292 = vld [vmem:[#allocation7 + $0xcc] sm:$0xff]
    %v293 = vld [vmem:[#allocation7 + $0xd4] sm:$0xf]
    %v294 = vld [vmem:[#allocation7 + $0xd8] sm:$0xff]
    %v295 = vld [vmem:[#allocation7 + $0xe0] sm:$0xf]
    %v296 = vld [vmem:[#allocation7 + $0xe4] sm:$0xff]
    %v297 = vld [vmem:[#allocation7 + $0xec] sm:$0xf]
    %v298 = vld [vmem:[#allocation7 + $0xf0] sm:$0xff]
    %v299 = vld [vmem:[#allocation7 + $0xf8] sm:$0xf]
    %v300 = vld [vmem:[#allocation7 + $0xfc] sm:$0xff]
    %v301 = vld [vmem:[#allocation7 + $0x104] sm:$0xf]
    %v302 = vld [vmem:[#allocation7 + $0x108] sm:$0xff]
    %v303 = vld [vmem:[#allocation7 + $0x110] sm:$0xf]
    %v304 = vld [vmem:[#allocation7 + $0x114] sm:$0xff]
    %v305 = vld [vmem:[#allocation7 + $0x11c] sm:$0xf]
    %v306 = vld [vmem:[#allocation7 + $0x120] sm:$0xff]
    %v307 = vld [vmem:[#allocation7 + $0x128] sm:$0xf]
    %v308 = vld [vmem:[#allocation7 + $0x12c] sm:$0xff]
    %v309 = vld [vmem:[#allocation7 + $0x134] sm:$0xf]
    %v310 = vld [vmem:[#allocation7 + $0x138] sm:$0xff]
    %v311 = vld [vmem:[#allocation7 + $0x140] sm:$0xf]
    %v312 = vld [vmem:[#allocation7 + $0x144] sm:$0xff]
    %v313 = vld [vmem:[#allocation7 + $0x14c] sm:$0xf]
    %v314 = vld [vmem:[#allocation7 + $0x150] sm:$0xff]
    %v315 = vld [vmem:[#allocation7 + $0x158] sm:$0xf]
    %v316 = vld [vmem:[#allocation7 + $0x15c] sm:$0xff]
    %v317 = vld [vmem:[#allocation7 + $0x164] sm:$0xf]
    %v318 = vld [vmem:[#allocation7 + $0x168] sm:$0xff]
    %v319 = vld [vmem:[#allocation7 + $0x170] sm:$0xf]
    %v320 = vld [vmem:[#allocation7 + $0x174] sm:$0xff]
    %v321 = vld [vmem:[#allocation7 + $0x17c] sm:$0xf]
    %v322 = vld [vmem:[#allocation7 + $0x180] sm:$0xff]
    %v323 = vld [vmem:[#allocation7 + $0x188] sm:$0xf]
    %v324 = vld [vmem:[#allocation7 + $0x18c] sm:$0xff]
    %v325 = vld [vmem:[#allocation7 + $0x194] sm:$0xf]
    %v326 = vld [vmem:[#allocation7 + $0x198] sm:$0xff]
    %v327 = vld [vmem:[#allocation7 + $0x1a0] sm:$0xf]
    %v328 = vld [vmem:[#allocation7 + $0x1a4] sm:$0xff]
    %v329 = vld [vmem:[#allocation7 + $0x1ac] sm:$0xf]
    %v330 = vld [vmem:[#allocation7 + $0x1b0] sm:$0xff]
    %v331 = vld [vmem:[#allocation7 + $0x1b8] sm:$0xf]
    %v332 = vld [vmem:[#allocation7 + $0x1bc] sm:$0xff]
    %v333 = vld [vmem:[#allocation7 + $0x1c4] sm:$0xf]
    %v334 = vld [vmem:[#allocation7 + $0x1c8] sm:$0xff]
    %v335 = vld [vmem:[#allocation7 + $0x1d0] sm:$0xf]
    %v336 = vld [vmem:[#allocation7 + $0x1d4] sm:$0xff]
    %v337 = vld [vmem:[#allocation7 + $0x1dc] sm:$0xf]
    %v338 = vld [vmem:[#allocation7 + $0x1e0] sm:$0xff]
    %v339 = vld [vmem:[#allocation7 + $0x1e8] sm:$0xf]
    %v340 = vld [vmem:[#allocation7 + $0x1ec] sm:$0xff]
    %v341 = vld [vmem:[#allocation7 + $0x1f4] sm:$0xf]
    %v342 = vld [vmem:[#allocation7 + $0x1f8] sm:$0xff]
    %v343 = vld [vmem:[#allocation7 + $0x200] sm:$0xf]
    %v344 = vld [vmem:[#allocation7 + $0x204] sm:$0xff]
    %v345 = vld [vmem:[#allocation7 + $0x20c] sm:$0xf]
    %v346 = vld [vmem:[#allocation7 + $0x210] sm:$0xff]
    %v347 = vld [vmem:[#allocation7 + $0x218] sm:$0xf]
    %v348 = vld [vmem:[#allocation7 + $0x21c] sm:$0xff]
    %v349 = vld [vmem:[#allocation7 + $0x224] sm:$0xf]
    %v350 = vld [vmem:[#allocation7 + $0x228] sm:$0xff]
    %v351 = vld [vmem:[#allocation7 + $0x230] sm:$0xf]
    %v352 = vld [vmem:[#allocation7 + $0x234] sm:$0xff]
    %v353 = vld [vmem:[#allocation7 + $0x23c] sm:$0xf]
    %v354 = vld [vmem:[#allocation7 + $0x240] sm:$0xff]
    %v355 = vld [vmem:[#allocation7 + $0x248] sm:$0xf]
    %v356 = vld [vmem:[#allocation7 + $0x24c] sm:$0xff]
    %v357 = vld [vmem:[#allocation7 + $0x254] sm:$0xf]
    %v358 = vld [vmem:[#allocation7 + $0x258] sm:$0xff]
    %v359 = vld [vmem:[#allocation7 + $0x260] sm:$0xf]
    %v360 = vld [vmem:[#allocation7 + $0x264] sm:$0xff]
    %v361 = vld [vmem:[#allocation7 + $0x26c] sm:$0xf]
    %v362 = vld [vmem:[#allocation7 + $0x270] sm:$0xff]
    %v363 = vld [vmem:[#allocation7 + $0x278] sm:$0xf]
    %v364 = vld [vmem:[#allocation7 + $0x27c] sm:$0xff]
    %v365 = vld [vmem:[#allocation7 + $0x284] sm:$0xf]
    %v366 = vld [vmem:[#allocation7 + $0x288] sm:$0xff]
    %v367 = vld [vmem:[#allocation7 + $0x290] sm:$0xf]
    %v368 = vld [vmem:[#allocation7 + $0x294] sm:$0xff]
    %v369 = vld [vmem:[#allocation7 + $0x29c] sm:$0xf]
    %v370 = vld [vmem:[#allocation7 + $0x2a0] sm:$0xff]
    %v371 = vld [vmem:[#allocation7 + $0x2a8] sm:$0xf]
    %v372 = vld [vmem:[#allocation7 + $0x2ac] sm:$0xff]
    %v373 = vld [vmem:[#allocation7 + $0x2b4] sm:$0xf]
    %v374 = vld [vmem:[#allocation7 + $0x2b8] sm:$0xff]
    %v375 = vld [vmem:[#allocation7 + $0x2c0] sm:$0xf]
    %v376 = vld [vmem:[#allocation7 + $0x2c4] sm:$0xff]
    %v377 = vld [vmem:[#allocation7 + $0x2cc] sm:$0xf]
    %v378 = vld [vmem:[#allocation7 + $0x2d0] sm:$0xff]
    %v379 = vld [vmem:[#allocation7 + $0x2d8] sm:$0xf]
    %v380 = vld [vmem:[#allocation7 + $0x2dc] sm:$0xff]
    %v381 = vld [vmem:[#allocation7 + $0x2e4] sm:$0xf]
    %v382 = vld [vmem:[#allocation7 + $0x2e8] sm:$0xff]
    %v383 = vld [vmem:[#allocation7 + $0x2f0] sm:$0xf]
    %v384 = vld [vmem:[#allocation7 + $0x2f4] sm:$0xff]
    %v385 = vld [vmem:[#allocation7 + $0x2fc] sm:$0xf]
    %v514 = vunpack.c.l.b16 %v258
    %v515 = vunpack.c.h.b16 %v258
    %v516 = vunpack.c.l.b16 %v259
    %v517 = vunpack.c.l.b16 %v260
    %v518 = vunpack.c.h.b16 %v260
    %v519 = vunpack.c.l.b16 %v261
    %v520 = vunpack.c.l.b16 %v262
    %v521 = vunpack.c.h.b16 %v262
    %v522 = vunpack.c.l.b16 %v263
    %v523 = vunpack.c.l.b16 %v264
    %v524 = vunpack.c.h.b16 %v264
    %v525 = vunpack.c.l.b16 %v265
    %v526 = vunpack.c.l.b16 %v266
    %v527 = vunpack.c.h.b16 %v266
    %v528 = vunpack.c.l.b16 %v267
    %v529 = vunpack.c.l.b16 %v268
    %v530 = vunpack.c.h.b16 %v268
    %v531 = vunpack.c.l.b16 %v269
    %v532 = vunpack.c.l.b16 %v270
    %v533 = vunpack.c.h.b16 %v270
    %v534 = vunpack.c.l.b16 %v271
    %v535 = vunpack.c.l.b16 %v272
    %v536 = vunpack.c.h.b16 %v272
    %v537 = vunpack.c.l.b16 %v273
    %v538 = vunpack.c.l.b16 %v274
    %v539 = vunpack.c.h.b16 %v274
    %v540 = vunpack.c.l.b16 %v275
    %v541 = vunpack.c.l.b16 %v276
    %v542 = vunpack.c.h.b16 %v276
    %v543 = vunpack.c.l.b16 %v277
    %v544 = vunpack.c.l.b16 %v278
    %v545 = vunpack.c.h.b16 %v278
    %v546 = vunpack.c.l.b16 %v279
    %v547 = vunpack.c.l.b16 %v280
    %v548 = vunpack.c.h.b16 %v280
    %v549 = vunpack.c.l.b16 %v281
    %v550 = vunpack.c.l.b16 %v282
    %v551 = vunpack.c.h.b16 %v282
    %v552 = vunpack.c.l.b16 %v283
    %v553 = vunpack.c.l.b16 %v284
    %v554 = vunpack.c.h.b16 %v284
    %v555 = vunpack.c.l.b16 %v285
    %v556 = vunpack.c.l.b16 %v286
    %v557 = vunpack.c.h.b16 %v286
    %v558 = vunpack.c.l.b16 %v287
    %v559 = vunpack.c.l.b16 %v288
    %v560 = vunpack.c.h.b16 %v288
    %v561 = vunpack.c.l.b16 %v289
    %v562 = vunpack.c.l.b16 %v290
    %v563 = vunpack.c.h.b16 %v290
    %v564 = vunpack.c.l.b16 %v291
    %v565 = vunpack.c.l.b16 %v292
    %v566 = vunpack.c.h.b16 %v292
    %v567 = vunpack.c.l.b16 %v293
    %v568 = vunpack.c.l.b16 %v294
    %v569 = vunpack.c.h.b16 %v294
    %v570 = vunpack.c.l.b16 %v295
    %v571 = vunpack.c.l.b16 %v296
    %v572 = vunpack.c.h.b16 %v296
    %v573 = vunpack.c.l.b16 %v297
    %v574 = vunpack.c.l.b16 %v298
    %v575 = vunpack.c.h.b16 %v298
    %v576 = vunpack.c.l.b16 %v299
    %v577 = vunpack.c.l.b16 %v300
    %v578 = vunpack.c.h.b16 %v300
    %v579 = vunpack.c.l.b16 %v301
    %v580 = vunpack.c.l.b16 %v302
    %v581 = vunpack.c.h.b16 %v302
    %v582 = vunpack.c.l.b16 %v303
    %v583 = vunpack.c.l.b16 %v304
    %v584 = vunpack.c.h.b16 %v304
    %v585 = vunpack.c.l.b16 %v305
    %v586 = vunpack.c.l.b16 %v306
    %v587 = vunpack.c.h.b16 %v306
    %v588 = vunpack.c.l.b16 %v307
    %v589 = vunpack.c.l.b16 %v308
    %v590 = vunpack.c.h.b16 %v308
    %v591 = vunpack.c.l.b16 %v309
    %v592 = vunpack.c.l.b16 %v310
    %v593 = vunpack.c.h.b16 %v310
    %v594 = vunpack.c.l.b16 %v311
    %v595 = vunpack.c.l.b16 %v312
    %v596 = vunpack.c.h.b16 %v312
    %v597 = vunpack.c.l.b16 %v313
    %v598 = vunpack.c.l.b16 %v314
    %v599 = vunpack.c.h.b16 %v314
    %v600 = vunpack.c.l.b16 %v315
    %v601 = vunpack.c.l.b16 %v316
    %v602 = vunpack.c.h.b16 %v316
    %v603 = vunpack.c.l.b16 %v317
    %v604 = vunpack.c.l.b16 %v318
    %v605 = vunpack.c.h.b16 %v318
    %v606 = vunpack.c.l.b16 %v319
    %v607 = vunpack.c.l.b16 %v320
    %v608 = vunpack.c.h.b16 %v320
    %v609 = vunpack.c.l.b16 %v321
    %v610 = vunpack.c.l.b16 %v322
    %v611 = vunpack.c.h.b16 %v322
    %v612 = vunpack.c.l.b16 %v323
    %v613 = vunpack.c.l.b16 %v324
    %v614 = vunpack.c.h.b16 %v324
    %v615 = vunpack.c.l.b16 %v325
    %v616 = vunpack.c.l.b16 %v326
    %v617 = vunpack.c.h.b16 %v326
    %v618 = vunpack.c.l.b16 %v327
    %v619 = vunpack.c.l.b16 %v328
    %v620 = vunpack.c.h.b16 %v328
    %v621 = vunpack.c.l.b16 %v329
    %v622 = vunpack.c.l.b16 %v330
    %v623 = vunpack.c.h.b16 %v330
    %v624 = vunpack.c.l.b16 %v331
    %v625 = vunpack.c.l.b16 %v332
    %v626 = vunpack.c.h.b16 %v332
    %v627 = vunpack.c.l.b16 %v333
    %v628 = vunpack.c.l.b16 %v334
    %v629 = vunpack.c.h.b16 %v334
    %v630 = vunpack.c.l.b16 %v335
    %v631 = vunpack.c.l.b16 %v336
    %v632 = vunpack.c.h.b16 %v336
    %v633 = vunpack.c.l.b16 %v337
    %v634 = vunpack.c.l.b16 %v338
    %v635 = vunpack.c.h.b16 %v338
    %v636 = vunpack.c.l.b16 %v339
    %v637 = vunpack.c.l.b16 %v340
    %v638 = vunpack.c.h.b16 %v340
    %v639 = vunpack.c.l.b16 %v341
    %v640 = vunpack.c.l.b16 %v342
    %v641 = vunpack.c.h.b16 %v342
    %v642 = vunpack.c.l.b16 %v343
    %v643 = vunpack.c.l.b16 %v344
    %v644 = vunpack.c.h.b16 %v344
    %v645 = vunpack.c.l.b16 %v345
    %v646 = vunpack.c.l.b16 %v346
    %v647 = vunpack.c.h.b16 %v346
    %v648 = vunpack.c.l.b16 %v347
    %v649 = vunpack.c.l.b16 %v348
    %v650 = vunpack.c.h.b16 %v348
    %v651 = vunpack.c.l.b16 %v349
    %v652 = vunpack.c.l.b16 %v350
    %v653 = vunpack.c.h.b16 %v350
    %v654 = vunpack.c.l.b16 %v351
    %v655 = vunpack.c.l.b16 %v352
    %v656 = vunpack.c.h.b16 %v352
    %v657 = vunpack.c.l.b16 %v353
    %v658 = vunpack.c.l.b16 %v354
    %v659 = vunpack.c.h.b16 %v354
    %v660 = vunpack.c.l.b16 %v355
    %v661 = vunpack.c.l.b16 %v356
    %v662 = vunpack.c.h.b16 %v356
    %v663 = vunpack.c.l.b16 %v357
    %v664 = vunpack.c.l.b16 %v358
    %v665 = vunpack.c.h.b16 %v358
    %v666 = vunpack.c.l.b16 %v359
    %v667 = vunpack.c.l.b16 %v360
    %v668 = vunpack.c.h.b16 %v360
    %v669 = vunpack.c.l.b16 %v361
    %v670 = vunpack.c.l.b16 %v362
    %v671 = vunpack.c.h.b16 %v362
    %v672 = vunpack.c.l.b16 %v363
    %v673 = vunpack.c.l.b16 %v364
    %v674 = vunpack.c.h.b16 %v364
    %v675 = vunpack.c.l.b16 %v365
    %v676 = vunpack.c.l.b16 %v366
    %v677 = vunpack.c.h.b16 %v366
    %v678 = vunpack.c.l.b16 %v367
    %v679 = vunpack.c.l.b16 %v368
    %v680 = vunpack.c.h.b16 %v368
    %v681 = vunpack.c.l.b16 %v369
    %v682 = vunpack.c.l.b16 %v370
    %v683 = vunpack.c.h.b16 %v370
    %v684 = vunpack.c.l.b16 %v371
    %v685 = vunpack.c.l.b16 %v372
    %v686 = vunpack.c.h.b16 %v372
    %v687 = vunpack.c.l.b16 %v373
    %v688 = vunpack.c.l.b16 %v374
    %v689 = vunpack.c.h.b16 %v374
    %v690 = vunpack.c.l.b16 %v375
    %v691 = vunpack.c.l.b16 %v376
    %v692 = vunpack.c.h.b16 %v376
    %v693 = vunpack.c.l.b16 %v377
    %v694 = vunpack.c.l.b16 %v378
    %v695 = vunpack.c.h.b16 %v378
    %v696 = vunpack.c.l.b16 %v379
    %v697 = vunpack.c.l.b16 %v380
    %v698 = vunpack.c.h.b16 %v380
    %v699 = vunpack.c.l.b16 %v381
    %v700 = vunpack.c.l.b16 %v382
    %v701 = vunpack.c.h.b16 %v382
    %v702 = vunpack.c.l.b16 %v383
    %v703 = vunpack.c.l.b16 %v384
    %v704 = vunpack.c.h.b16 %v384
    %v705 = vunpack.c.l.b16 %v385
    %v706 = vpack.c.b16 %v517, %v514
    %v707 = vpack.c.b16 %v518, %v515
    %v708 = vpack.c.b16 %v519, %v516
    %v709 = vpack.c.b16 %v523, %v520
    %v710 = vpack.c.b16 %v524, %v521
    %v711 = vpack.c.b16 %v525, %v522
    %v712 = vpack.c.b16 %v529, %v526
    %v713 = vpack.c.b16 %v530, %v527
    %v714 = vpack.c.b16 %v531, %v528
    %v715 = vpack.c.b16 %v535, %v532
    %v716 = vpack.c.b16 %v536, %v533
    %v717 = vpack.c.b16 %v537, %v534
    %v718 = vpack.c.b16 %v541, %v538
    %v719 = vpack.c.b16 %v542, %v539
    %v720 = vpack.c.b16 %v543, %v540
    %v721 = vpack.c.b16 %v547, %v544
    %v722 = vpack.c.b16 %v548, %v545
    %v723 = vpack.c.b16 %v549, %v546
    %v724 = vpack.c.b16 %v553, %v550
    %v725 = vpack.c.b16 %v554, %v551
    %v726 = vpack.c.b16 %v555, %v552
    %v727 = vpack.c.b16 %v559, %v556
    %v728 = vpack.c.b16 %v560, %v557
    %v729 = vpack.c.b16 %v561, %v558
    %v730 = vpack.c.b16 %v565, %v562
    %v731 = vpack.c.b16 %v566, %v563
    %v732 = vpack.c.b16 %v567, %v564
    %v733 = vpack.c.b16 %v571, %v568
    %v734 = vpack.c.b16 %v572, %v569
    %v735 = vpack.c.b16 %v573, %v570
    %v736 = vpack.c.b16 %v577, %v574
    %v737 = vpack.c.b16 %v578, %v575
    %v738 = vpack.c.b16 %v579, %v576
    %v739 = vpack.c.b16 %v583, %v580
    %v740 = vpack.c.b16 %v584, %v581
    %v741 = vpack.c.b16 %v585, %v582
    %v742 = vpack.c.b16 %v589, %v586
    %v743 = vpack.c.b16 %v590, %v587
    %v744 = vpack.c.b16 %v591, %v588
    %v745 = vpack.c.b16 %v595, %v592
    %v746 = vpack.c.b16 %v596, %v593
    %v747 = vpack.c.b16 %v597, %v594
    %v748 = vpack.c.b16 %v601, %v598
    %v749 = vpack.c.b16 %v602, %v599
    %v750 = vpack.c.b16 %v603, %v600
    %v751 = vpack.c.b16 %v607, %v604
    %v752 = vpack.c.b16 %v608, %v605
    %v753 = vpack.c.b16 %v609, %v606
    %v754 = vpack.c.b16 %v613, %v610
    %v755 = vpack.c.b16 %v614, %v611
    %v756 = vpack.c.b16 %v615, %v612
    %v757 = vpack.c.b16 %v619, %v616
    %v758 = vpack.c.b16 %v620, %v617
    %v759 = vpack.c.b16 %v621, %v618
    %v760 = vpack.c.b16 %v625, %v622
    %v761 = vpack.c.b16 %v626, %v623
    %v762 = vpack.c.b16 %v627, %v624
    %v763 = vpack.c.b16 %v631, %v628
    %v764 = vpack.c.b16 %v632, %v629
    %v765 = vpack.c.b16 %v633, %v630
    %v766 = vpack.c.b16 %v637, %v634
    %v767 = vpack.c.b16 %v638, %v635
    %v768 = vpack.c.b16 %v639, %v636
    %v769 = vpack.c.b16 %v643, %v640
    %v770 = vpack.c.b16 %v644, %v641
    %v771 = vpack.c.b16 %v645, %v642
    %v772 = vpack.c.b16 %v649, %v646
    %v773 = vpack.c.b16 %v650, %v647
    %v774 = vpack.c.b16 %v651, %v648
    %v775 = vpack.c.b16 %v655, %v652
    %v776 = vpack.c.b16 %v656, %v653
    %v777 = vpack.c.b16 %v657, %v654
    %v778 = vpack.c.b16 %v661, %v658
    %v779 = vpack.c.b16 %v662, %v659
    %v780 = vpack.c.b16 %v663, %v660
    %v781 = vpack.c.b16 %v667, %v664
    %v782 = vpack.c.b16 %v668, %v665
    %v783 = vpack.c.b16 %v669, %v666
    %v784 = vpack.c.b16 %v673, %v670
    %v785 = vpack.c.b16 %v674, %v671
    %v786 = vpack.c.b16 %v675, %v672
    %v787 = vpack.c.b16 %v679, %v676
    %v788 = vpack.c.b16 %v680, %v677
    %v789 = vpack.c.b16 %v681, %v678
    %v790 = vpack.c.b16 %v685, %v682
    %v791 = vpack.c.b16 %v686, %v683
    %v792 = vpack.c.b16 %v687, %v684
    %v793 = vpack.c.b16 %v691, %v688
    %v794 = vpack.c.b16 %v692, %v689
    %v795 = vpack.c.b16 %v693, %v690
    %v796 = vpack.c.b16 %v697, %v694
    %v797 = vpack.c.b16 %v698, %v695
    %v798 = vpack.c.b16 %v699, %v696
    %v799 = vpack.c.b16 %v703, %v700
    %v800 = vpack.c.b16 %v704, %v701
    %v801 = vpack.c.b16 %v705, %v702
    %898 = vmatprep.subr.bf16.mxu0 %v707
    %899 = vmatpush1.bf16.msra.mxu0 %v706
    %900 = vmatprep.subr.bf16.mxu0 %v710
    %901 = vmatpush1.bf16.msra.mxu0 %v709
    %902 = vmatprep.subr.bf16.mxu0 %v713
    %903 = vmatpush1.bf16.msra.mxu0 %v712
    %904 = vmatprep.subr.bf16.mxu0 %v716
    %905 = vmatpush1.bf16.msra.mxu0 %v715
    %906 = vmatprep.subr.bf16.mxu0 %v719
    %907 = vmatpush1.bf16.msra.mxu0 %v718
    %908 = vmatprep.subr.bf16.mxu0 %v722
    %909 = vmatpush1.bf16.msra.mxu0 %v721
    %910 = vmatprep.subr.bf16.mxu0 %v725
    %911 = vmatpush1.bf16.msra.mxu0 %v724
    %912 = vmatprep.subr.bf16.mxu0 %v728
    %913 = vmatpush1.bf16.msra.mxu0 %v727
    %914 = vmatprep.subr.bf16.mxu0 %v731
    %915 = vmatpush1.bf16.msra.mxu0 %v730
    %916 = vmatprep.subr.bf16.mxu0 %v734
    %917 = vmatpush1.bf16.msra.mxu0 %v733
    %918 = vmatprep.subr.bf16.mxu0 %v737
    %919 = vmatpush1.bf16.msra.mxu0 %v736
    %920 = vmatprep.subr.bf16.mxu0 %v740
    %921 = vmatpush1.bf16.msra.mxu0 %v739
    %922 = vmatprep.subr.bf16.mxu0 %v743
    %923 = vmatpush1.bf16.msra.mxu0 %v742
    %924 = vmatprep.subr.bf16.mxu0 %v746
    %925 = vmatpush1.bf16.msra.mxu0 %v745
    %926 = vmatprep.subr.bf16.mxu0 %v749
    %927 = vmatpush1.bf16.msra.mxu0 %v748
    %928 = vmatprep.subr.bf16.mxu0 %v752
    %929 = vmatpush1.bf16.msra.mxu0 %v751
    %930 = vmatprep.mubr.bf16.mxu0 %v255
    %931 = vmatmul.mubr.bf16.gmra.mrb[0].mxu0 %v254
    %v932 = vpop.f32.mrb[0].mxu0
    %v933 = vadd.f32 0.0, %v932
    %v934 = vpop.f32.mrb[0].mxu0
    %v935 = vadd.f32 0.0, %v934
    %v936 = vpop.f32.mrb[0].mxu0
    %v937 = vadd.f32 0.0, %v936
    %v938 = vpop.f32.mrb[0].mxu0
    %v939 = vadd.f32 0.0, %v938
    %940 = vdwg.mxu0
    %941 = vmatprep.subr.bf16.mxu0 %v755
    %942 = vmatpush1.bf16.msra.mxu0 %v754
    %943 = vmatprep.subr.bf16.mxu0 %v758
    %944 = vmatpush1.bf16.msra.mxu0 %v757
    %945 = vmatprep.subr.bf16.mxu0 %v761
    %946 = vmatpush1.bf16.msra.mxu0 %v760
    %947 = vmatprep.subr.bf16.mxu0 %v764
    %948 = vmatpush1.bf16.msra.mxu0 %v763
    %949 = vmatprep.subr.bf16.mxu0 %v767
    %950 = vmatpush1.bf16.msra.mxu0 %v766
    %951 = vmatprep.subr.bf16.mxu0 %v770
    %952 = vmatpush1.bf16.msra.mxu0 %v769
    %953 = vmatprep.subr.bf16.mxu0 %v773
    %954 = vmatpush1.bf16.msra.mxu0 %v772
    %955 = vmatprep.subr.bf16.mxu0 %v776
    %956 = vmatpush1.bf16.msra.mxu0 %v775
    %957 = vmatprep.subr.bf16.mxu0 %v779
    %958 = vmatpush1.bf16.msra.mxu0 %v778
    %959 = vmatprep.subr.bf16.mxu0 %v782
    %960 = vmatpush1.bf16.msra.mxu0 %v781
    %961 = vmatprep.subr.bf16.mxu0 %v785
    %962 = vmatpush1.bf16.msra.mxu0 %v784
    %963 = vmatprep.subr.bf16.mxu0 %v788
    %964 = vmatpush1.bf16.msra.mxu0 %v787
    %965 = vmatprep.subr.bf16.mxu0 %v791
    %966 = vmatpush1.bf16.msra.mxu0 %v790
    %967 = vmatprep.subr.bf16.mxu0 %v794
    %968 = vmatpush1.bf16.msra.mxu0 %v793
    %969 = vmatprep.subr.bf16.mxu0 %v797
    %970 = vmatpush1.bf16.msra.mxu0 %v796
    %971 = vmatprep.subr.bf16.mxu0 %v800
    %972 = vmatpush1.bf16.msra.mxu0 %v799
    %973 = vmatprep.mubr.bf16.mxu0 %v257
    %974 = vmatmul.mubr.bf16.gmra.mrb[0].mxu0 %v256
    %v975 = vpop.f32.mrb[0].mxu0
    %v976 = vadd.f32 %v933, %v975
    %v977 = vpop.f32.mrb[0].mxu0
    %v978 = vadd.f32 %v935, %v977
    %v979 = vpop.f32.mrb[0].mxu0
    %v980 = vadd.f32 %v937, %v979
    %v981 = vpop.f32.mrb[0].mxu0
    %v982 = vadd.f32 %v939, %v981
    %983 = vdwg.mxu0
    %984 = vmatprep.subr.bf16.mxu0 0
    %985 = vmatpush1.bf16.msra.mxu0 %v708
    %986 = vmatprep.subr.bf16.mxu0 0
    %987 = vmatpush1.bf16.msra.mxu0 %v711
    %988 = vmatprep.subr.bf16.mxu0 0
    %989 = vmatpush1.bf16.msra.mxu0 %v714
    %990 = vmatprep.subr.bf16.mxu0 0
    %991 = vmatpush1.bf16.msra.mxu0 %v717
    %992 = vmatprep.subr.bf16.mxu0 0
    %993 = vmatpush1.bf16.msra.mxu0 %v720
    %994 = vmatprep.subr.bf16.mxu0 0
    %995 = vmatpush1.bf16.msra.mxu0 %v723
    %996 = vmatprep.subr.bf16.mxu0 0
    %997 = vmatpush1.bf16.msra.mxu0 %v726
    %998 = vmatprep.subr.bf16.mxu0 0
    %999 = vmatpush1.bf16.msra.mxu0 %v729
    %1000 = vmatprep.subr.bf16.mxu0 0
    %1001 = vmatpush1.bf16.msra.mxu0 %v732
    %1002 = vmatprep.subr.bf16.mxu0 0
    %1003 = vmatpush1.bf16.msra.mxu0 %v735
    %1004 = vmatprep.subr.bf16.mxu0 0
    %1005 = vmatpush1.bf16.msra.mxu0 %v738
    %1006 = vmatprep.subr.bf16.mxu0 0
    %1007 = vmatpush1.bf16.msra.mxu0 %v741
    %1008 = vmatprep.subr.bf16.mxu0 0
    %1009 = vmatpush1.bf16.msra.mxu0 %v744
    %1010 = vmatprep.subr.bf16.mxu0 0
    %1011 = vmatpush1.bf16.msra.mxu0 %v747
    %1012 = vmatprep.subr.bf16.mxu0 0
    %1013 = vmatpush1.bf16.msra.mxu0 %v750
    %1014 = vmatprep.subr.bf16.mxu0 0
    %1015 = vmatpush1.bf16.msra.mxu0 %v753
    %1016 = vmatprep.mubr.bf16.mxu0 %v255
    %1017 = vmatmul.mubr.bf16.gmra.mrb[0].mxu0 %v254
    %v1018 = vpop.f32.mrb[0].mxu0
    %v1019 = vadd.f32 0.0, %v1018
    %v1020 = vpop.f32.mrb[0].mxu0
    %v1021 = vpop.f32.mrb[0].mxu0
    %v1022 = vadd.f32 0.0, %v1021
    %v1023 = vpop.f32.mrb[0].mxu0
    %1024 = vdwg.mxu0
    %1025 = vmatprep.subr.bf16.mxu0 0
    %1026 = vmatpush1.bf16.msra.mxu0 %v756
    %1027 = vmatprep.subr.bf16.mxu0 0
    %1028 = vmatpush1.bf16.msra.mxu0 %v759
    %1029 = vmatprep.subr.bf16.mxu0 0
    %1030 = vmatpush1.bf16.msra.mxu0 %v762
    %1031 = vmatprep.subr.bf16.mxu0 0
    %1032 = vmatpush1.bf16.msra.mxu0 %v765
    %1033 = vmatprep.subr.bf16.mxu0 0
    %1034 = vmatpush1.bf16.msra.mxu0 %v768
    %1035 = vmatprep.subr.bf16.mxu0 0
    %1036 = vmatpush1.bf16.msra.mxu0 %v771
    %1037 = vmatprep.subr.bf16.mxu0 0
    %1038 = vmatpush1.bf16.msra.mxu0 %v774
    %1039 = vmatprep.subr.bf16.mxu0 0
    %1040 = vmatpush1.bf16.msra.mxu0 %v777
    %1041 = vmatprep.subr.bf16.mxu0 0
    %1042 = vmatpush1.bf16.msra.mxu0 %v780
    %1043 = vmatprep.subr.bf16.mxu0 0
    %1044 = vmatpush1.bf16.msra.mxu0 %v783
    %1045 = vmatprep.subr.bf16.mxu0 0
    %1046 = vmatpush1.bf16.msra.mxu0 %v786
    %1047 = vmatprep.subr.bf16.mxu0 0
    %1048 = vmatpush1.bf16.msra.mxu0 %v789
    %1049 = vmatprep.subr.bf16.mxu0 0
    %1050 = vmatpush1.bf16.msra.mxu0 %v792
    %1051 = vmatprep.subr.bf16.mxu0 0
    %1052 = vmatpush1.bf16.msra.mxu0 %v795
    %1053 = vmatprep.subr.bf16.mxu0 0
    %1054 = vmatpush1.bf16.msra.mxu0 %v798
    %1055 = vmatprep.subr.bf16.mxu0 0
    %1056 = vmatpush1.bf16.msra.mxu0 %v801
    %1057 = vmatprep.mubr.bf16.mxu0 %v257
    %1058 = vmatmul.mubr.bf16.gmra.mrb[0].mxu0 %v256
    %v1059 = vpop.f32.mrb[0].mxu0
    %v1060 = vadd.f32 %v1019, %v1059
    %v1061 = vpop.f32.mrb[0].mxu0
    %v1062 = vpop.f32.mrb[0].mxu0
    %v1063 = vadd.f32 %v1022, %v1062
    %v1064 = vpop.f32.mrb[0].mxu0
    %1065 = vdwg.mxu0
    %v1066 = vmax.f32 %v976, 0.0
    %v1067 = vmax.f32 %v978, 0.0
    %v1068 = vmax.f32 %v1060, 0.0
    %v1069 = vmax.f32 %v980, 0.0
    %v1070 = vmax.f32 %v982, 0.0
    %v1071 = vmax.f32 %v1063, 0.0
    %v1072 = vpack.c.bf16 %v1069, %v1066
    %v1073 = vpack.c.bf16 %v1070, %v1067
    %v1074 = vpack.c.bf16 %v1071, %v1068
    %v1075 = vld [vmem:[#allocation8] sm:$0xf]
    %v1076 = vld [vmem:[#allocation8 + $0x4] sm:$0xf]
    %v1077 = vld [vmem:[#allocation8 + $0x8] sm:$0xf]
    %v1078 = vld [vmem:[#allocation8 + $0xc] sm:$0xf]
    %v1079 = vld [vmem:[#allocation8 + $0x10] sm:$0xf]
    %v1080 = vld [vmem:[#allocation8 + $0x14] sm:$0xf]
    %v1081 = vld [vmem:[#allocation8 + $0x18] sm:$0xf]
    %v1082 = vld [vmem:[#allocation8 + $0x1c] sm:$0xf]
    %v1083 = vld [vmem:[#allocation8 + $0x20] sm:$0xf]
    %v1084 = vld [vmem:[#allocation8 + $0x24] sm:$0xf]
    %v1085 = vld [vmem:[#allocation8 + $0x28] sm:$0xf]
    %v1086 = vld [vmem:[#allocation8 + $0x2c] sm:$0xf]
    %v1087 = vld [vmem:[#allocation8 + $0x30] sm:$0xf]
    %v1088 = vld [vmem:[#allocation8 + $0x34] sm:$0xf]
    %v1089 = vld [vmem:[#allocation8 + $0x38] sm:$0xf]
    %v1090 = vld [vmem:[#allocation8 + $0x3c] sm:$0xf]
    %v1091 = vld [vmem:[#allocation8 + $0x40] sm:$0xf]
    %v1092 = vld [vmem:[#allocation8 + $0x44] sm:$0xf]
    %v1093 = vld [vmem:[#allocation8 + $0x48] sm:$0xf]
    %v1094 = vld [vmem:[#allocation8 + $0x4c] sm:$0xf]
    %v1095 = vld [vmem:[#allocation8 + $0x50] sm:$0xf]
    %v1096 = vld [vmem:[#allocation8 + $0x54] sm:$0xf]
    %v1097 = vld [vmem:[#allocation8 + $0x58] sm:$0xf]
    %v1098 = vld [vmem:[#allocation8 + $0x5c] sm:$0xf]
    %v1099 = vld [vmem:[#allocation8 + $0x60] sm:$0xf]
    %v1100 = vld [vmem:[#allocation8 + $0x64] sm:$0xf]
    %v1101 = vld [vmem:[#allocation8 + $0x68] sm:$0xf]
    %v1102 = vld [vmem:[#allocation8 + $0x6c] sm:$0xf]
    %v1103 = vld [vmem:[#allocation8 + $0x70] sm:$0xf]
    %v1104 = vld [vmem:[#allocation8 + $0x74] sm:$0xf]
    %v1105 = vld [vmem:[#allocation8 + $0x78] sm:$0xf]
    %v1106 = vld [vmem:[#allocation8 + $0x7c] sm:$0xf]
    %v1107 = vld [vmem:[#allocation8 + $0x80] sm:$0xf]
    %v1108 = vld [vmem:[#allocation8 + $0x84] sm:$0xf]
    %v1109 = vld [vmem:[#allocation8 + $0x88] sm:$0xf]
    %v1110 = vld [vmem:[#allocation8 + $0x8c] sm:$0xf]
    %v1111 = vld [vmem:[#allocation8 + $0x90] sm:$0xf]
    %v1112 = vld [vmem:[#allocation8 + $0x94] sm:$0xf]
    %v1113 = vld [vmem:[#allocation8 + $0x98] sm:$0xf]
    %v1114 = vld [vmem:[#allocation8 + $0x9c] sm:$0xf]
    %v1115 = vld [vmem:[#allocation8 + $0xa0] sm:$0xf]
    %v1116 = vld [vmem:[#allocation8 + $0xa4] sm:$0xf]
    %v1117 = vld [vmem:[#allocation8 + $0xa8] sm:$0xf]
    %v1118 = vld [vmem:[#allocation8 + $0xac] sm:$0xf]
    %v1119 = vld [vmem:[#allocation8 + $0xb0] sm:$0xf]
    %v1120 = vld [vmem:[#allocation8 + $0xb4] sm:$0xf]
    %v1121 = vld [vmem:[#allocation8 + $0xb8] sm:$0xf]
    %v1122 = vld [vmem:[#allocation8 + $0xbc] sm:$0xf]
    %v1171 = vunpack.c.l.b16 %v1075
    %v1172 = vunpack.c.l.b16 %v1076
    %v1173 = vunpack.c.l.b16 %v1077
    %v1174 = vunpack.c.l.b16 %v1078
    %v1175 = vunpack.c.l.b16 %v1079
    %v1176 = vunpack.c.l.b16 %v1080
    %v1177 = vunpack.c.l.b16 %v1081
    %v1178 = vunpack.c.l.b16 %v1082
    %v1179 = vunpack.c.l.b16 %v1083
    %v1180 = vunpack.c.l.b16 %v1084
    %v1181 = vunpack.c.l.b16 %v1085
    %v1182 = vunpack.c.l.b16 %v1086
    %v1183 = vunpack.c.l.b16 %v1087
    %v1184 = vunpack.c.l.b16 %v1088
    %v1185 = vunpack.c.l.b16 %v1089
    %v1186 = vunpack.c.l.b16 %v1090
    %v1187 = vunpack.c.l.b16 %v1091
    %v1188 = vunpack.c.l.b16 %v1092
    %v1189 = vunpack.c.l.b16 %v1093
    %v1190 = vunpack.c.l.b16 %v1094
    %v1191 = vunpack.c.l.b16 %v1095
    %v1192 = vunpack.c.l.b16 %v1096
    %v1193 = vunpack.c.l.b16 %v1097
    %v1194 = vunpack.c.l.b16 %v1098
    %v1195 = vunpack.c.l.b16 %v1099
    %v1196 = vunpack.c.l.b16 %v1100
    %v1197 = vunpack.c.l.b16 %v1101
    %v1198 = vunpack.c.l.b16 %v1102
    %v1199 = vunpack.c.l.b16 %v1103
    %v1200 = vunpack.c.l.b16 %v1104
    %v1201 = vunpack.c.l.b16 %v1105
    %v1202 = vunpack.c.l.b16 %v1106
    %v1203 = vunpack.c.l.b16 %v1107
    %v1204 = vunpack.c.l.b16 %v1108
    %v1205 = vunpack.c.l.b16 %v1109
    %v1206 = vunpack.c.l.b16 %v1110
    %v1207 = vunpack.c.l.b16 %v1111
    %v1208 = vunpack.c.l.b16 %v1112
    %v1209 = vunpack.c.l.b16 %v1113
    %v1210 = vunpack.c.l.b16 %v1114
    %v1211 = vunpack.c.l.b16 %v1115
    %v1212 = vunpack.c.l.b16 %v1116
    %v1213 = vunpack.c.l.b16 %v1117
    %v1214 = vunpack.c.l.b16 %v1118
    %v1215 = vunpack.c.l.b16 %v1119
    %v1216 = vunpack.c.l.b16 %v1120
    %v1217 = vunpack.c.l.b16 %v1121
    %v1218 = vunpack.c.l.b16 %v1122
    %v1219 = vpack.c.b16 %v1172, %v1171
    %v1220 = vpack.c.b16 %v1174, %v1173
    %v1221 = vpack.c.b16 %v1176, %v1175
    %v1222 = vpack.c.b16 %v1178, %v1177
    %v1223 = vpack.c.b16 %v1180, %v1179
    %v1224 = vpack.c.b16 %v1182, %v1181
    %v1225 = vpack.c.b16 %v1184, %v1183
    %v1226 = vpack.c.b16 %v1186, %v1185
    %v1227 = vpack.c.b16 %v1188, %v1187
    %v1228 = vpack.c.b16 %v1190, %v1189
    %v1229 = vpack.c.b16 %v1192, %v1191
    %v1230 = vpack.c.b16 %v1194, %v1193
    %v1231 = vpack.c.b16 %v1196, %v1195
    %v1232 = vpack.c.b16 %v1198, %v1197
    %v1233 = vpack.c.b16 %v1200, %v1199
    %v1234 = vpack.c.b16 %v1202, %v1201
    %v1235 = vpack.c.b16 %v1204, %v1203
    %v1236 = vpack.c.b16 %v1206, %v1205
    %v1237 = vpack.c.b16 %v1208, %v1207
    %v1238 = vpack.c.b16 %v1210, %v1209
    %v1239 = vpack.c.b16 %v1212, %v1211
    %v1240 = vpack.c.b16 %v1214, %v1213
    %v1241 = vpack.c.b16 %v1216, %v1215
    %v1242 = vpack.c.b16 %v1218, %v1217
    %1267 = vmatprep.subr.bf16.mxu0 0
    %1268 = vmatpush1.bf16.msra.mxu0 %v1219
    %1269 = vmatprep.subr.bf16.mxu0 0
    %1270 = vmatpush1.bf16.msra.mxu0 %v1220
    %1271 = vmatprep.subr.bf16.mxu0 0
    %1272 = vmatpush1.bf16.msra.mxu0 %v1221
    %1273 = vmatprep.subr.bf16.mxu0 0
    %1274 = vmatpush1.bf16.msra.mxu0 %v1222
    %1275 = vmatprep.subr.bf16.mxu0 0
    %1276 = vmatpush1.bf16.msra.mxu0 %v1223
    %1277 = vmatprep.subr.bf16.mxu0 0
    %1278 = vmatpush1.bf16.msra.mxu0 %v1224
    %1279 = vmatprep.subr.bf16.mxu0 0
    %1280 = vmatpush1.bf16.msra.mxu0 %v1225
    %1281 = vmatprep.subr.bf16.mxu0 0
    %1282 = vmatpush1.bf16.msra.mxu0 %v1226
    %1283 = vmatprep.subr.bf16.mxu0 0
    %1284 = vmatpush1.bf16.msra.mxu0 %v1227
    %1285 = vmatprep.subr.bf16.mxu0 0
    %1286 = vmatpush1.bf16.msra.mxu0 %v1228
    %1287 = vmatprep.subr.bf16.mxu0 0
    %1288 = vmatpush1.bf16.msra.mxu0 %v1229
    %1289 = vmatprep.subr.bf16.mxu0 0
    %1290 = vmatpush1.bf16.msra.mxu0 %v1230
    %1291 = vmatprep.subr.bf16.mxu0 0
    %1292 = vmatpush1.bf16.msra.mxu0 %v1231
    %1293 = vmatprep.subr.bf16.mxu0 0
    %1294 = vmatpush1.bf16.msra.mxu0 %v1232
    %1295 = vmatprep.subr.bf16.mxu0 0
    %1296 = vmatpush1.bf16.msra.mxu0 %v1233
    %1297 = vmatprep.subr.bf16.mxu0 0
    %1298 = vmatpush1.bf16.msra.mxu0 %v1234
    %1299 = vmatprep.mubr.bf16.mxu0 %v1073
    %1300 = vmatmul.mubr.bf16.gmra.mrb[0].mxu0 %v1072
    %v1301 = vpop.f32.mrb[0].mxu0
    %v1302 = vadd.f32 0.0, %v1301
    %v1303 = vpop.f32.mrb[0].mxu0
    %v1304 = vpop.f32.mrb[0].mxu0
    %v1305 = vadd.f32 0.0, %v1304
    %v1306 = vpop.f32.mrb[0].mxu0
    %1307 = vdwg.mxu0
    %1308 = vmatprep.subr.bf16.mxu0 0
    %1309 = vmatpush1.bf16.msra.mxu0 %v1235
    %1310 = vmatprep.subr.bf16.mxu0 0
    %1311 = vmatpush1.bf16.msra.mxu0 %v1236
    %1312 = vmatprep.subr.bf16.mxu0 0
    %1313 = vmatpush1.bf16.msra.mxu0 %v1237
    %1314 = vmatprep.subr.bf16.mxu0 0
    %1315 = vmatpush1.bf16.msra.mxu0 %v1238
    %1316 = vmatprep.subr.bf16.mxu0 0
    %1317 = vmatpush1.bf16.msra.mxu0 %v1239
    %1318 = vmatprep.subr.bf16.mxu0 0
    %1319 = vmatpush1.bf16.msra.mxu0 %v1240
    %1320 = vmatprep.subr.bf16.mxu0 0
    %1321 = vmatpush1.bf16.msra.mxu0 %v1241
    %1322 = vmatprep.subr.bf16.mxu0 0
    %1323 = vmatpush1.bf16.msra.mxu0 %v1242
    %1324 = vmatprep.subr.bf16.mxu0 0
    %1325 = vmatpush1.bf16.msra.mxu0 0
    %1326 = vmatprep.subr.bf16.mxu0 0
    %1327 = vmatpush1.bf16.msra.mxu0 0
    %1328 = vmatprep.subr.bf16.mxu0 0
    %1329 = vmatpush1.bf16.msra.mxu0 0
    %1330 = vmatprep.subr.bf16.mxu0 0
    %1331 = vmatpush1.bf16.msra.mxu0 0
    %1332 = vmatprep.subr.bf16.mxu0 0
    %1333 = vmatpush1.bf16.msra.mxu0 0
    %1334 = vmatprep.subr.bf16.mxu0 0
    %1335 = vmatpush1.bf16.msra.mxu0 0
    %1336 = vmatprep.subr.bf16.mxu0 0
    %1337 = vmatpush1.bf16.msra.mxu0 0
    %1338 = vmatprep.subr.bf16.mxu0 0
    %1339 = vmatpush1.bf16.msra.mxu0 0
    %1340 = vmatprep.mubr.bf16.mxu0 0
    %1341 = vmatmul.mubr.bf16.gmra.mrb[0].mxu0 %v1074
    %v1342 = vpop.f32.mrb[0].mxu0
    %v1343 = vadd.f32 %v1302, %v1342
    %v1344 = vpop.f32.mrb[0].mxu0
    %v1345 = vpop.f32.mrb[0].mxu0
    %v1346 = vadd.f32 %v1305, %v1345
    %v1347 = vpop.f32.mrb[0].mxu0
    %1348 = vdwg.mxu0
    %v1349 = vmax.f32 %v1343, 0.0
    %v1350 = vmax.f32 %v1346, 0.0
    %v1351 = vand.u32 2147483647, %v1343
    %v1352 = vand.u32 2147483647, %v1346
    %v1353 = vsub.f32 0.0, %v1351
    %v1354 = vsub.f32 0.0, %v1352
    %v1355 = vmul.f32 %v1353, 1.442695
    %v1356 = vpow.pop %v1355
    %v1357 = vmul.f32 %v1354, 1.442695
    %v1358 = vpow.pop %v1357
    %v1359 = vadd.f32 %v1356, 1.0
    %v1360 = vlog2.pop %v1359
    %v1361 = vmul.f32 %v1360, 0.6931472
    %v1362 = vmul.f32 -0.5, %v1356
    %v1363 = vadd.f32 %v1362, 1.0
    %v1364 = vmul.f32 %v1363, %v1356
    %v1365 = vand.u32 2147483647, %v1356
    %vm1366 = vcmp.lt.f32.partialorder %v1365, 0.0004427343
    %v1367 = vsel %vm1366, %v1364, %v1361
    %v1368 = vadd.f32 %v1358, 1.0
    %v1369 = vlog2.pop %v1368
    %v1370 = vmul.f32 %v1369, 0.6931472
    %v1371 = vmul.f32 -0.5, %v1358
    %v1372 = vadd.f32 %v1371, 1.0
    %v1373 = vmul.f32 %v1372, %v1358
    %v1374 = vand.u32 2147483647, %v1358
    %vm1375 = vcmp.lt.f32.partialorder %v1374, 0.0004427343
    %v1376 = vsel %vm1375, %v1373, %v1370
    %v1377 = vadd.f32 %v1349, %v1367
    %v1378 = vadd.f32 %v1350, %v1376
    %v1379 = vadd.f32 %v1377, 1.0
    %v1380 = vadd.f32 %v1378, 1.0
    %v1381 = vpack.c.bf16 %v1380, %v1379
    %v1383 = vunpack.c.l.b16 %v1381
    %v1384 = vunpack.c.h.b16 %v1381
    %v1385 = vpack.c.b16 %v1383, %v1383
    %v1386 = vpack.c.b16 %v1384, %v1384
    %1389 = vst [vmem:[#allocation10] sm:$0xf] %v1385
    %1390 = vst [vmem:[#allocation10 + $0x4] sm:$0xf] %v1386
    // Predicated region
    $region34: #{tpu_custom_call.1} parent=1 // pred_check
      _
    $region35: #{tpu_custom_call.1} parent=1 // pred_check_branch
      %1392 = sbr.rel (0) target = $region37
    $region36: #{tpu_custom_call.1} parent=1 // pred_region
      %s1394 = ssub.s32 128, 128
      %1395 = vsyncadd [#allocation4], %s1394
      %s1396 = sshll.u32 [#allocation10], 4
      %s1397 = int_to_ptr.vmem [resolvable:$true] %s1396
      %1402 = dma.vmem_to_hbm [thread:$0]  %s1397, 128, %s4, [#allocation4], 64, 64, 4
    $region37: #{tpu_custom_call.1} parent=1 // pred_fallthru
      _
    // Predicated region
    $region38: #{tpu_custom_call.1} parent=1 // pred_check
      _
    $region39: #{tpu_custom_call.1} parent=1 // pred_check_branch
      %1404 = sbr.rel (0) target = $region41
    $region40: #{tpu_custom_call.1} parent=1 // pred_region
      %1405 = dma.done [#allocation4], 128
    $region41: #{tpu_custom_call.1} parent=1 // pred_fallthru
      _
    %1406 = vsyncpa [#allocation3], 1
    %1407 = vsyncpa [#allocation6], 1
    %1408 = vsyncpa [#allocation9], 1
    %1409 = vsyncpa [#allocation4], 1

</llo_original>
